<compile_context>
chip_gen: v7x
topology: tpu7x:2x2x1
jax: 0.10.0
libtpu: 0.0.40
codegen_flags: <defaults>
</compile_context>

<pallas_src>
import functools

import jax
import jax.numpy as jnp
from jax.experimental import pallas as pl
from jax.experimental.pallas import tpu as pltpu

_EPS = 1e-5
_LANE = 128
# ~2 MiB per block -> double-buffered input+output is ~8 MiB of live VMEM,
# comfortably under the default scoped limit on every TPU generation while
# being big enough to sit near the HBM roofline (mem-bound elementwise op).
_TARGET_BLOCK_BYTES = 2 * 1024 * 1024


def _pad_lanes(a, cp):
    """Zero-pad the last (lane) axis of `a` out to `cp` columns."""
    c = a.shape[-1]
    if c == cp:
        return a
    pad = [(0, 0)] * (a.ndim - 1) + [(0, cp - c)]
    return jnp.pad(a, pad)


def _largest_divisor_leq(n, cap):
    cap = max(1, min(n, int(cap)))
    for d in range(cap, 0, -1):
        if n % d == 0:
            return d
    return 1


def _pick_c_tile(cp, rows, elem_bytes=4):
    """Largest lane-aligned divisor of cp keeping a (rows, ct) block <= budget."""
    m = cp // _LANE
    max_lane_groups = max(1, _TARGET_BLOCK_BYTES // (rows * _LANE * elem_bytes))
    return _LANE * _largest_divisor_leq(m, max_lane_groups)


# ----------------------------------------------------------------------------
# Kernels
# ----------------------------------------------------------------------------

def _gbn_train_kernel(x_ref, gamma_ref, beta_ref, o_ref):
    # x_ref block: (k, cs, ct) — k virtual batches per grid step; per-chunk
    # batch-norm statistics reduce over axis=1 (the virtual-batch rows).
    x = x_ref[...].astype(jnp.float32)                              # (k, cs, ct)
    mean = jnp.mean(x, axis=1, keepdims=True)                       # (k, 1, ct)
    centered = x - mean
    var = jnp.mean(centered * centered, axis=1, keepdims=True)      # biased var
    # Reassociated affine: per-feature scale/shift, then one mul + one add.
    scale = jax.lax.rsqrt(var + _EPS) * gamma_ref[...]              # (k, 1, ct)
    shift = beta_ref[...] - mean * scale                            # (k, 1, ct)
    o_ref[...] = (x * scale + shift).astype(o_ref.dtype)


def _gbn_train_kernel_masked(x_ref, gamma_ref, beta_ref, o_ref, *,
                             k, cs, tail, num_chunks):
    # Same as above, but the (globally) last chunk only has `tail` < cs valid
    # rows; the extra rows were zero-padded in HBM and are masked out of the
    # statistics.  Out-of-range output rows are sliced off by the wrapper.
    x = x_ref[...].astype(jnp.float32)                              # (k, cs, ct)
    chunk_id = (pl.program_id(0) * k
                + jax.lax.broadcasted_iota(jnp.int32, (k, 1, 1), 0))
    rows = jnp.where(chunk_id == num_chunks - 1, tail, cs)          # (k, 1, 1)
    row_idx = jax.lax.broadcasted_iota(jnp.int32, (k, cs, 1), 1)
    mask = row_idx < rows                                           # (k, cs, 1)
    inv_n = 1.0 / rows.astype(jnp.float32)                          # (k, 1, 1)
    mean = jnp.sum(jnp.where(mask, x, 0.0), axis=1, keepdims=True) * inv_n
    centered = x - mean
    var = jnp.sum(jnp.where(mask, centered * centered, 0.0),
                  axis=1, keepdims=True) * inv_n
    scale = jax.lax.rsqrt(var + _EPS) * gamma_ref[...]
    shift = beta_ref[...] - mean * scale
    o_ref[...] = (x * scale + shift).astype(o_ref.dtype)


def _affine_kernel(x_ref, scale_ref, shift_ref, o_ref):
    # Eval-mode BN: y = x * scale + shift with precomputed per-feature values.
    x = x_ref[...].astype(jnp.float32)
    o_ref[...] = (x * scale_ref[...] + shift_ref[...]).astype(o_ref.dtype)


# ----------------------------------------------------------------------------
# Wrappers
# ----------------------------------------------------------------------------

def _run_train_chunks(x3, gamma3, beta3, *, tail=None, num_chunks=None):
    """x3: (num_chunks, chunk_size, cp) — BN each chunk independently."""
    nc, cs, cp = x3.shape
    ct = _pick_c_tile(cp, cs)
    # Pack multiple virtual batches per grid step when a single chunk block is
    # small, amortizing the ~0.35 us/step grid overhead.
    k = _largest_divisor_leq(nc, max(1, _TARGET_BLOCK_BYTES // (cs * ct * 4)))
    if tail is None:
        kernel = _gbn_train_kernel
    else:
        kernel = functools.partial(_gbn_train_kernel_masked, k=k, cs=cs,
                                   tail=tail, num_chunks=num_chunks)
    grid = (nc // k, cp // ct)
    return pl.pallas_call(
        kernel,
        out_shape=jax.ShapeDtypeStruct((nc, cs, cp), x3.dtype),
        grid=grid,
        in_specs=[
            pl.BlockSpec((k, cs, ct), lambda i, j: (i, 0, j)),   # packed chunks
            pl.BlockSpec((1, 1, ct), lambda i, j: (0, 0, j)),    # gamma (bcast)
            pl.BlockSpec((1, 1, ct), lambda i, j: (0, 0, j)),    # beta  (bcast)
        ],
        out_specs=pl.BlockSpec((k, cs, ct), lambda i, j: (i, 0, j)),
        compiler_params=pltpu.CompilerParams(
            dimension_semantics=("parallel", "parallel")),
    )(x3, gamma3, beta3)


def gbn_forward(x, gamma, beta, running_mean, running_var,
                virtual_batch_size=512, training=True):
    n, c = x.shape
    cp = ((c + _LANE - 1) // _LANE) * _LANE          # lane-dense feature width
    gamma_p = _pad_lanes(gamma.astype(jnp.float32).reshape(1, c), cp)
    beta_p = _pad_lanes(beta.astype(jnp.float32).reshape(1, c), cp)

    if training:
        # torch.chunk semantics: num_chunks = ceil(n / vbs); every chunk has
        # ceil(n / num_chunks) rows except a possibly-smaller last one.
        vbs = int(virtual_batch_size)
        num_chunks = -(-n // vbs)
        cs = -(-n // num_chunks)
        tail = n - (num_chunks - 1) * cs
        n_pad = num_chunks * cs                      # rows after (optional) pad

        x_p = jnp.pad(x, ((0, n_pad - n), (0, cp - c)))
        x3 = x_p.reshape(num_chunks, cs, cp)
        gamma3 = gamma_p.reshape(1, 1, cp)
        beta3 = beta_p.reshape(1, 1, cp)

        if tail == cs:                               # uniform chunks: no mask
            out = _run_train_chunks(x3, gamma3, beta3)
        else:                                        # ragged last chunk
            out = _run_train_chunks(x3, gamma3, beta3,
                                    tail=tail, num_chunks=num_chunks)
        # TODO(synk): PyTorch's inner BatchNorm1d also updates running_mean /
        # running_var (momentum, unbiased var) on every training forward; those
        # buffer updates are not reproduced here (forward output is unaffected).
        return out.reshape(n_pad, cp)[:n, :c]
    else:
        # Eval path: per-feature scale/shift from running statistics, then a
        # tiled, pipelined elementwise affine over (N, C).
        x_p = _pad_lanes(x, cp)
        rv = _pad_lanes(running_var.astype(jnp.float32).reshape(1, c), cp)
        rm = _pad_lanes(running_mean.astype(jnp.float32).reshape(1, c), cp)
        scale = gamma_p * jax.lax.rsqrt(rv + _EPS)
        shift = beta_p - rm * scale

        tile_n = n if n <= 1024 else 1024            # full dim or multiple of 8
        ct = _pick_c_tile(cp, tile_n)
        grid = (pl.cdiv(n, tile_n), cp // ct)
        out = pl.pallas_call(
            _affine_kernel,
            out_shape=jax.ShapeDtypeStruct((n, cp), x.dtype),
            grid=grid,
            in_specs=[
                pl.BlockSpec((tile_n, ct), lambda i, j: (i, j)),
                pl.BlockSpec((1, ct), lambda i, j: (0, j)),
                pl.BlockSpec((1, ct), lambda i, j: (0, j)),
            ],
            out_specs=pl.BlockSpec((tile_n, ct), lambda i, j: (i, j)),
            compiler_params=pltpu.CompilerParams(
                dimension_semantics=("parallel", "parallel")),
        )(x_p, scale, shift)
        return out[:, :c]


# ----------------------------------------------------------------------------
# Pure-JAX references (for correctness checks)
# ----------------------------------------------------------------------------

def _reference_train(x, gamma, beta, vbs):
    n = x.shape[0]
    num_chunks = -(-n // vbs)
    cs = -(-n // num_chunks)
    outs = []
    for start in range(0, n, cs):
        xc = x[start:start + cs]
        m = xc.mean(axis=0, keepdims=True)
        v = ((xc - m) ** 2).mean(axis=0, keepdims=True)
        outs.append((xc - m) / jnp.sqrt(v + _EPS) * gamma[None, :] + beta[None, :])
    return jnp.concatenate(outs, axis=0)


def _reference_eval(x, gamma, beta, rm, rv):
    return (x - rm[None, :]) / jnp.sqrt(rv[None, :] + _EPS) * gamma[None, :] + beta[None, :]


if __name__ == "__main__":
    key = jax.random.PRNGKey(0)
    kx, kg, kb, km, kv, kx2 = jax.random.split(key, 6)

    # Case 1: uniform chunks, C not lane-aligned (exercises C padding).
    N1, C1, VBS1 = 16, 32, 8
    x1 = jax.random.normal(kx, (N1, C1), dtype=jnp.float32)
    g1 = 1.0 + 0.1 * jax.random.normal(kg, (C1,), dtype=jnp.float32)
    b1 = 0.1 * jax.random.normal(kb, (C1,), dtype=jnp.float32)
    rm1 = 0.05 * jax.random.normal(km, (C1,), dtype=jnp.float32)
    rv1 = 1.0 + 0.1 * jnp.abs(jax.random.normal(kv, (C1,), dtype=jnp.float32))

    out1 = jax.block_until_ready(
        gbn_forward(x1, g1, b1, rm1, rv1, virtual_batch_size=VBS1, training=True))
    ref1 = _reference_train(x1, g1, b1, VBS1)
    assert out1.shape == (N1, C1)
    assert jnp.allclose(out1, ref1, atol=1e-4, rtol=1e-4)

    out1e = jax.block_until_ready(
        gbn_forward(x1, g1, b1, rm1, rv1, virtual_batch_size=VBS1, training=False))
    ref1e = _reference_eval(x1, g1, b1, rm1, rv1)
    assert jnp.allclose(out1e, ref1e, atol=1e-4, rtol=1e-4)

    # Case 2: ragged chunks (torch.chunk): N=20, VBS=8 -> chunk sizes 7, 7, 6.
    N2, C2, VBS2 = 20, 48, 8
    x2 = jax.random.normal(kx2, (N2, C2), dtype=jnp.float32)
    g2 = 1.0 + 0.1 * jax.random.normal(kg, (C2,), dtype=jnp.float32)
    b2 = 0.1 * jax.random.normal(kb, (C2,), dtype=jnp.float32)
    out2 = jax.block_until_ready(
        gbn_forward(x2, g2, b2, jnp.zeros((C2,)), jnp.ones((C2,)),
                    virtual_batch_size=VBS2, training=True))
    ref2 = _reference_train(x2, g2, b2, VBS2)
    assert out2.shape == (N2, C2)
    assert jnp.allclose(out2, ref2, atol=1e-4, rtol=1e-4)

    print("KERNEL_OK")
</pallas_src>

<mosaic_0001>
module attributes {stable_mosaic.version = 11 : i64} {
  func.func @_gbn_train_kernel(%arg0: i32, %arg1: i32, %arg2: memref<2x8x128xf32, #tpu.memory_space<vmem>>, %arg3: memref<1x1x128xf32, #tpu.memory_space<vmem>>, %arg4: memref<1x1x128xf32, #tpu.memory_space<vmem>>, %arg5: memref<2x8x128xf32, #tpu.memory_space<vmem>>) attributes {dimension_semantics = [#tpu.dimension_semantics<parallel>, #tpu.dimension_semantics<parallel>], iteration_bounds = array<i64: 1, 1>, scalar_prefetch = 0 : i64, scratch_operands = 0 : i64, tpu.core_type = #tpu.core_type<tc>, window_params = [{transform_indices = @transform_0, window_bounds = array<i64: 2, 8, 128>}, {transform_indices = @transform_1, window_bounds = array<i64: 1, 1, 128>}, {transform_indices = @transform_2, window_bounds = array<i64: 1, 1, 128>}, {transform_indices = @transform_3, window_bounds = array<i64: 2, 8, 128>}]} {
    %c0 = arith.constant 0 : index
    %c0_0 = arith.constant 0 : index
    %c0_1 = arith.constant 0 : index
    %0 = vector.load %arg2[%c0, %c0_0, %c0_1] : memref<2x8x128xf32, #tpu.memory_space<vmem>>, vector<2x8x128xf32>
    %cst = arith.constant dense<0.000000e+00> : vector<2x128xf32>
    %1 = vector.multi_reduction <add>, %0, %cst [1] : vector<2x8x128xf32> to vector<2x128xf32>
    %2 = vector.shape_cast %1 : vector<2x128xf32> to vector<2x1x128xf32>
    %cst_2 = arith.constant 8.000000e+00 : f32
    %3 = vector.broadcast %cst_2 : f32 to vector<2x1x128xf32>
    %4 = arith.divf %2, %3 : vector<2x1x128xf32>
    %5 = vector.broadcast %4 : vector<2x1x128xf32> to vector<2x8x128xf32>
    %6 = arith.subf %0, %5 : vector<2x8x128xf32>
    %7 = arith.mulf %6, %6 : vector<2x8x128xf32>
    %cst_3 = arith.constant dense<0.000000e+00> : vector<2x128xf32>
    %8 = vector.multi_reduction <add>, %7, %cst_3 [1] : vector<2x8x128xf32> to vector<2x128xf32>
    %9 = vector.shape_cast %8 : vector<2x128xf32> to vector<2x1x128xf32>
    %cst_4 = arith.constant 8.000000e+00 : f32
    %10 = vector.broadcast %cst_4 : f32 to vector<2x1x128xf32>
    %11 = arith.divf %9, %10 : vector<2x1x128xf32>
    %cst_5 = arith.constant 9.99999974E-6 : f32
    %12 = vector.broadcast %cst_5 : f32 to vector<2x1x128xf32>
    %13 = arith.addf %11, %12 : vector<2x1x128xf32>
    %14 = math.rsqrt %13 : vector<2x1x128xf32>
    %c0_6 = arith.constant 0 : index
    %c0_7 = arith.constant 0 : index
    %c0_8 = arith.constant 0 : index
    %15 = vector.load %arg3[%c0_6, %c0_7, %c0_8] : memref<1x1x128xf32, #tpu.memory_space<vmem>>, vector<1x1x128xf32>
    %16 = vector.broadcast %15 : vector<1x1x128xf32> to vector<2x1x128xf32>
    %17 = arith.mulf %14, %16 : vector<2x1x128xf32>
    %c0_9 = arith.constant 0 : index
    %c0_10 = arith.constant 0 : index
    %c0_11 = arith.constant 0 : index
    %18 = vector.load %arg4[%c0_9, %c0_10, %c0_11] : memref<1x1x128xf32, #tpu.memory_space<vmem>>, vector<1x1x128xf32>
    %19 = arith.mulf %4, %17 : vector<2x1x128xf32>
    %20 = vector.broadcast %18 : vector<1x1x128xf32> to vector<2x1x128xf32>
    %21 = arith.subf %20, %19 : vector<2x1x128xf32>
    %22 = vector.broadcast %17 : vector<2x1x128xf32> to vector<2x8x128xf32>
    %23 = arith.mulf %0, %22 : vector<2x8x128xf32>
    %24 = vector.broadcast %21 : vector<2x1x128xf32> to vector<2x8x128xf32>
    %25 = arith.addf %23, %24 : vector<2x8x128xf32>
    %c0_12 = arith.constant 0 : index
    %c0_13 = arith.constant 0 : index
    %c0_14 = arith.constant 0 : index
    %26 = vector.load %arg5[%c0_12, %c0_13, %c0_14] : memref<2x8x128xf32, #tpu.memory_space<vmem>>, vector<2x8x128xf32>
    tpu.vector_store %arg5[%c0_12, %c0_13, %c0_14], %25 {strides = array<i32>} : memref<2x8x128xf32, #tpu.memory_space<vmem>>, vector<2x8x128xf32>,
    return
  }
  func.func @transform_0(%arg0: i32, %arg1: i32) -> (i32, i32, i32) {
    %c0_i32 = arith.constant 0 : i32
    %c0_i32_0 = arith.constant 0 : i32
    return %arg0, %c0_i32, %arg1 : i32, i32, i32
  }
  func.func @transform_1(%arg0: i32, %arg1: i32) -> (i32, i32, i32) {
    %c0_i32 = arith.constant 0 : i32
    %c0_i32_0 = arith.constant 0 : i32
    %c0_i32_1 = arith.constant 0 : i32
    return %c0_i32, %c0_i32_0, %arg1 : i32, i32, i32
  }
  func.func @transform_2(%arg0: i32, %arg1: i32) -> (i32, i32, i32) {
    %c0_i32 = arith.constant 0 : i32
    %c0_i32_0 = arith.constant 0 : i32
    %c0_i32_1 = arith.constant 0 : i32
    return %c0_i32, %c0_i32_0, %arg1 : i32, i32, i32
  }
  func.func @transform_3(%arg0: i32, %arg1: i32) -> (i32, i32, i32) {
    %c0_i32 = arith.constant 0 : i32
    %c0_i32_0 = arith.constant 0 : i32
    return %arg0, %c0_i32, %arg1 : i32, i32, i32
  }
}

</mosaic_0001>

<llo_original>
// kernel: tpu_custom_call.1
$region0: #{tpu_custom_call.1}
  #allocation0 [shape = 'u32[]', space=smem, size = 0x4, offset = 0x4, fixed_abs, tag = 'smem constant byte address 0x4 - core index']
  #allocation1 [shape = 'u32[144,128]{1,0:T(1,128)}', space=vmem, size = 0x12000, scoped, tag = 'internal scratch']
  %s0 = inlined_call_operand.hbm [shape: f32[2,8,128], index: 0, kind: input, shape index: {}]
  %s1 = inlined_call_operand.vmem [shape: f32[1,1,128], index: 1, kind: input, shape index: {}]
  %s2 = inlined_call_operand.vmem [shape: f32[1,1,128], index: 2, kind: input, shape index: {}]
  %s3 = inlined_call_operand.hbm [shape: f32[2,8,128], index: 3, kind: output, shape index: {}]
  %s4 = sld [smem:[#allocation0]]
  $region26: #{tpu_custom_call.1} parent=0
    _
  %s6 = ssub.s32 1, %s4
  %s7 = scalar_select 0, %s6, %s4
  $region1: #{tpu_custom_call.1} parent=0
    #allocation2 [shape = 'u8[8192]{0}', space=vmem, size = 0x2000, scoped, tag = 'input window, operand 0, single buffered']
    #allocation3 [shape = 's32[1]{0}', space=sflag, size = 0x4, scoped, tag = 'scoped memory for tpu_custom_call.1']
    #allocation4 [shape = 's32[1]{0}', space=sflag, size = 0x4, scoped, tag = 'scoped memory for tpu_custom_call.1']
    #allocation5 [shape = 'u8[8192]{0}', space=vmem, size = 0x2000, scoped, tag = 'output window, operand 0, single buffered']
    %8 = vsyncpa [#allocation3], 0
    %9 = vsyncpa [#allocation4], 0
    // Predicated region
    $region2: #{tpu_custom_call.1} parent=1 // pred_check
      _
    $region3: #{tpu_custom_call.1} parent=1 // pred_check_branch
      %11 = sbr.rel (0) target = $region5
    $region4: #{tpu_custom_call.1} parent=1 // pred_region
      %s13 = ssub.s32 256, 256
      %14 = vsyncadd [#allocation3], %s13
      %s15 = sshll.u32 [#allocation2], 4
      %s16 = int_to_ptr.vmem [resolvable:$true] %s15
      %21 = dma.hbm_to_vmem [thread:$0]  %s0, 256, %s16, [#allocation3], 128, 128, 8
    $region5: #{tpu_custom_call.1} parent=1 // pred_fallthru
      _
    // Predicated region
    $region6: #{tpu_custom_call.1} parent=1 // pred_check
      _
    $region7: #{tpu_custom_call.1} parent=1 // pred_check_branch
      %23 = sbr.rel (0) target = $region9
    $region8: #{tpu_custom_call.1} parent=1 // pred_region
      _
    $region9: #{tpu_custom_call.1} parent=1 // pred_fallthru
      _
    // Predicated region
    $region10: #{tpu_custom_call.1} parent=1 // pred_check
      _
    $region11: #{tpu_custom_call.1} parent=1 // pred_check_branch
      %25 = sbr.rel (0) target = $region13
    $region12: #{tpu_custom_call.1} parent=1 // pred_region
      _
    $region13: #{tpu_custom_call.1} parent=1 // pred_fallthru
      _
    // Predicated region
    $region14: #{tpu_custom_call.1} parent=1 // pred_check
      _
    $region15: #{tpu_custom_call.1} parent=1 // pred_check_branch
      %27 = sbr.rel (0) target = $region17
    $region16: #{tpu_custom_call.1} parent=1 // pred_region
      %28 = dma.done [#allocation3], 256
    $region17: #{tpu_custom_call.1} parent=1 // pred_fallthru
      _
    %v29 = vld [vmem:[#allocation2] sm:$0xff]
    %v30 = vld [vmem:[#allocation2 + $0x8] sm:$0xff]
    %v31 = vrot.slane %v29, 4
    %v32 = vadd.f32 %v29, %v31
    %v33 = vrot.slane %v32, 2
    %v34 = vadd.f32 %v32, %v33
    %v35 = vrot.slane %v34, 1
    %v36 = vadd.f32 %v34, %v35
    %v37 = vrot.slane %v30, 4
    %v38 = vadd.f32 %v30, %v37
    %v39 = vrot.slane %v38, 2
    %v40 = vadd.f32 %v38, %v39
    %v41 = vrot.slane %v40, 1
    %v42 = vadd.f32 %v40, %v41
    %v43 = vrcp.pop 8.0
    %v44 = vmul.f32 %v36, %v43
    %v45 = vmul.f32 %v42, %v43
    %v46 = vsub.f32 %v29, %v44
    %v47 = vsub.f32 %v30, %v45
    %v48 = vmul.f32 %v46, %v46
    %v49 = vmul.f32 %v47, %v47
    %v50 = vrot.slane %v48, 4
    %v51 = vadd.f32 %v48, %v50
    %v52 = vrot.slane %v51, 2
    %v53 = vadd.f32 %v51, %v52
    %v54 = vrot.slane %v53, 1
    %v55 = vadd.f32 %v53, %v54
    %v56 = vrot.slane %v49, 4
    %v57 = vadd.f32 %v49, %v56
    %v58 = vrot.slane %v57, 2
    %v59 = vadd.f32 %v57, %v58
    %v60 = vrot.slane %v59, 1
    %v61 = vadd.f32 %v59, %v60
    %v62 = vmul.f32 %v55, %v43
    %v63 = vmul.f32 %v61, %v43
    %v64 = vadd.f32 %v62, 1e-05
    %v65 = vadd.f32 %v63, 1e-05
    %v66 = vrsqrt.pop %v64
    %v67 = vrsqrt.pop %v65
    %v68 = vld [vmem:[%s1] sm:$0x1]
    %v69 = vmul.f32 %v66, %v68
    %v70 = vmul.f32 %v67, %v68
    %v71 = vld [vmem:[%s2] sm:$0x1]
    %v72 = vmul.f32 %v44, %v69
    %v73 = vmul.f32 %v45, %v70
    %v74 = vsub.f32 %v71, %v72
    %v75 = vsub.f32 %v71, %v73
    %v76 = vlaneseq
    %v77 = vshrl.u32 %v76, 7
    %v78 = vsub.s32 0, %v77
    %v79 = vrot.slane %v69, %v78
    %v80 = vlaneseq
    %v81 = vshrl.u32 %v80, 7
    %v82 = vsub.s32 0, %v81
    %v83 = vrot.slane %v70, %v82
    %v84 = vmul.f32 %v29, %v79
    %v85 = vmul.f32 %v30, %v83
    %v88 = vlaneseq
    %v89 = vshrl.u32 %v88, 7
    %v90 = vsub.s32 0, %v89
    %v91 = vrot.slane %v74, %v90
    %v92 = vlaneseq
    %v93 = vshrl.u32 %v92, 7
    %v94 = vsub.s32 0, %v93
    %v95 = vrot.slane %v75, %v94
    %v98 = vadd.f32 %v84, %v91
    %v99 = vadd.f32 %v85, %v95
    %100 = vst [vmem:[#allocation5] sm:$0xff] %v98
    %101 = vst [vmem:[#allocation5 + $0x8] sm:$0xff] %v99
    // Predicated region
    $region18: #{tpu_custom_call.1} parent=1 // pred_check
      _
    $region19: #{tpu_custom_call.1} parent=1 // pred_check_branch
      %103 = sbr.rel (0) target = $region21
    $region20: #{tpu_custom_call.1} parent=1 // pred_region
      %s105 = ssub.s32 256, 256
      %106 = vsyncadd [#allocation4], %s105
      %s107 = sshll.u32 [#allocation5], 4
      %s108 = int_to_ptr.vmem [resolvable:$true] %s107
      %113 = dma.vmem_to_hbm [thread:$0]  %s108, 256, %s3, [#allocation4], 128, 128, 8
    $region21: #{tpu_custom_call.1} parent=1 // pred_fallthru
      _
    // Predicated region
    $region22: #{tpu_custom_call.1} parent=1 // pred_check
      _
    $region23: #{tpu_custom_call.1} parent=1 // pred_check_branch
      %115 = sbr.rel (0) target = $region25
    $region24: #{tpu_custom_call.1} parent=1 // pred_region
      %116 = dma.done [#allocation4], 256
    $region25: #{tpu_custom_call.1} parent=1 // pred_fallthru
      _
    %117 = vsyncpa [#allocation3], 1
    %118 = vsyncpa [#allocation4], 1

</llo_original>
